<compile_context>
chip_gen: v7x
topology: tpu7x:2x2x1
jax: 0.10.0
libtpu: 0.0.40
codegen_flags: <defaults>
</compile_context>

<pallas_src>
import jax
import jax.numpy as jnp
from jax import lax
from jax.experimental import pallas as pl
from jax.experimental.pallas import tpu as pltpu


# ---------------------------------------------------------------------------
# Stage 1: attention over the sequence -> (B, 2H) = [output_r, last_memory]
# ---------------------------------------------------------------------------
def attention_kernel(all_mem_ref, last_mem_ref, mask_ref,
                     u_w_ref, w_w_ref, v_w_ref, v_b_ref, out_ref):
    all_mem = all_mem_ref[...]                     # (B, S, H) f32
    last_mem = last_mem_ref[...]                   # (B, H)    f32
    B, S, H = all_mem.shape

    # U_repeat / W_repeat (no bias; dropout = identity in eval).
    # Fold batch into M: one (B*S, H) @ (H, H) matmul instead of B tiny ones.
    all_u = jnp.dot(all_mem.reshape(B * S, H), u_w_ref[...],
                    preferred_element_type=jnp.float32).reshape(B, S, H)
    last_w = jnp.dot(last_mem, w_w_ref[...],
                     preferred_element_type=jnp.float32)          # (B, H)

    # tanh(all + last.unsqueeze(1).repeat(1, S, 1))
    er = jnp.tanh(all_u + last_w[:, None, :])                     # (B, S, H)

    # V_repeat: Linear(H, 1) with bias (scalar bias from SMEM), then squeeze(-1)
    v_vec = v_w_ref[...]                                          # (1, H)
    logits = jnp.sum(er * v_vec[None, :, :], axis=-1) + v_b_ref[0, 0]   # (B, S)

    # optional sequence mask: masked_fill_(mask, -1e9); mask passed as int32
    logits = jnp.where(mask_ref[...] != 0, jnp.float32(-1e9), logits)

    # softmax over the sequence dim (dim=1)
    m = jnp.max(logits, axis=1, keepdims=True)
    e = jnp.exp(logits - m)
    alpha = e / jnp.sum(e, axis=1, keepdims=True)                 # (B, S)

    # output_r = (all_memory_values * alpha_r).sum(dim=1)
    out_r = jnp.sum(all_mem * alpha[:, :, None], axis=1)          # (B, H)

    # cat([output_r, last_memory_values], dim=1)
    out_ref[...] = jnp.concatenate([out_r, last_mem], axis=1)     # (B, 2H)


# ---------------------------------------------------------------------------
# Stage 2: N-tiled Repeat linear + candidate mask + sigmoid
# ---------------------------------------------------------------------------
def score_kernel(x_ref, item_seq_ref, rep_w_ref, rep_b_ref, out_ref):
    B, tile_n = out_ref.shape
    S = item_seq_ref.shape[1]

    # Fused Repeat linear for this N tile: (B, 2H) @ (2H, TILE_N) + bias
    scores = (jnp.dot(x_ref[...], rep_w_ref[...],
                      preferred_element_type=jnp.float32)
              + rep_b_ref[...])                                   # (B, TILE_N)

    # Candidate mask for this tile, built with a loop over S (only a (B, TILE_N)
    # boolean stays live -- no (B, S, N) intermediate).
    col0 = pl.program_id(0) * tile_n
    col_ids = lax.broadcasted_iota(jnp.int32, (B, tile_n), 1) + col0

    def body(s, cand):
        ids_s = item_seq_ref[:, pl.ds(s, 1)]                      # (B, 1) int32
        return jnp.logical_or(cand, ids_s == col_ids)

    cand = lax.fori_loop(0, S, body, jnp.zeros((B, tile_n), jnp.bool_))

    # Non-candidate items -> -inf -> sigmoid == 0 (matches the reference).
    out_ref[...] = jax.nn.sigmoid(jnp.where(cand, scores, -jnp.inf))


# ---------------------------------------------------------------------------
# Wrapper
# ---------------------------------------------------------------------------
def repeat_decoder_forward(all_memory, last_memory, item_seq, mask, params,
                           tile_n=128):
    """Two pallas_calls: a small attention kernel (single grid point) and an
    N-tiled scoring kernel (grid over the item dimension, 'parallel' so v7x's
    two TensorCores split it).  tile_n must be a multiple of 128; pick
    1024-2048 at production num_item."""
    B, S, H = all_memory.shape
    N = params['rep_b'].shape[-1]

    item_seq = item_seq.astype(jnp.int32)
    mask_i = mask.astype(jnp.int32)

    vmem = pl.BlockSpec(memory_space=pltpu.MemorySpace.VMEM)
    smem = pl.BlockSpec(memory_space=pltpu.MemorySpace.SMEM)

    # ---- Stage 1: attention -> x_cat = [output_r, last_memory]  (B, 2H) ----
    x_cat = pl.pallas_call(
        attention_kernel,
        out_shape=jax.ShapeDtypeStruct((B, 2 * H), jnp.float32),
        in_specs=[vmem, vmem, vmem, vmem, vmem, vmem, smem],
        out_specs=vmem,
    )(all_memory, last_memory, mask_i,
      params['u_wT'], params['w_wT'], params['v_w'], params['v_b'])

    # ---- Stage 2: N-tiled score linear + candidate mask + sigmoid ----------
    nt = pl.cdiv(N, tile_n)
    n_pad = nt * tile_n
    rep_wT = params['rep_wT']                                     # (2H, N)
    rep_b = params['rep_b']                                       # (1, N)
    if n_pad != N:
        rep_wT = jnp.pad(rep_wT, ((0, 0), (0, n_pad - N)))
        rep_b = jnp.pad(rep_b, ((0, 0), (0, n_pad - N)))

    out = pl.pallas_call(
        score_kernel,
        out_shape=jax.ShapeDtypeStruct((B, n_pad), jnp.float32),
        grid_spec=pltpu.PrefetchScalarGridSpec(
            num_scalar_prefetch=0,
            grid=(nt,),
            in_specs=[
                pl.BlockSpec((B, 2 * H), lambda j: (0, 0)),       # x_cat (resident)
                pl.BlockSpec((B, S), lambda j: (0, 0)),           # item_seq (resident)
                pl.BlockSpec((2 * H, tile_n), lambda j: (0, j)),  # fused Repeat weight tile
                pl.BlockSpec((1, tile_n), lambda j: (0, j)),      # Repeat bias tile
            ],
            out_specs=pl.BlockSpec((B, tile_n), lambda j: (0, j)),
        ),
        compiler_params=pltpu.CompilerParams(
            dimension_semantics=("parallel",)),
    )(x_cat, item_seq, rep_wT, rep_b)

    return out[:, :N] if n_pad != N else out


# ---------------------------------------------------------------------------
# Parameters / reference
# ---------------------------------------------------------------------------
def make_params(key, hidden_size, num_item):
    """Deterministic synthetic parameters matching the nn.Module shapes."""
    ks = jax.random.split(key, 5)
    H, N = hidden_size, num_item
    u_w = jax.random.normal(ks[0], (H, H), jnp.float32) * 0.1    # U_repeat.weight (out,in)
    w_w = jax.random.normal(ks[1], (H, H), jnp.float32) * 0.1    # W_repeat.weight
    v_w = jax.random.normal(ks[2], (1, H), jnp.float32) * 0.1    # V_repeat.weight (1,H)
    v_b = jnp.full((1, 1), 0.01, jnp.float32)                    # V_repeat.bias
    rep_w = jax.random.normal(ks[3], (N, 2 * H), jnp.float32) * 0.1  # Repeat.weight (N,2H)
    rep_b = jax.random.normal(ks[4], (1, N), jnp.float32) * 0.1      # Repeat.bias
    return {
        'u_wT': u_w.T,            # (H, H)   -> x @ u_wT == U_repeat(x)
        'w_wT': w_w.T,            # (H, H)
        'v_w': v_w,               # (1, H)
        'v_b': v_b,               # (1, 1)
        'rep_wT': rep_w.T,        # (2H, N)  fused: [out_r, last_mem] @ rep_wT
        'rep_b': rep_b,           # (1, N)
    }


def reference_forward(all_memory, last_memory, item_seq, mask, params):
    """Pure-JAX reference of the PyTorch forward (eval mode)."""
    N = params['rep_b'].shape[-1]
    all_u = jnp.einsum('bsh,hk->bsk', all_memory, params['u_wT'])
    last_w = last_memory @ params['w_wT']
    er = jnp.tanh(all_u + last_w[:, None, :])
    logits = jnp.sum(er * params['v_w'][None, :, :], axis=-1) + params['v_b'][0, 0]
    logits = jnp.where(mask, -1e9, logits)
    alpha = jax.nn.softmax(logits, axis=1)
    out_r = jnp.sum(all_memory * alpha[:, :, None], axis=1)
    x = jnp.concatenate([out_r, last_memory], axis=1)
    scores = x @ params['rep_wT'] + params['rep_b']
    is_cand = jnp.any(item_seq[:, :, None] == jnp.arange(N)[None, None, :], axis=1)
    return jax.nn.sigmoid(jnp.where(is_cand, scores, -jnp.inf))


if __name__ == "__main__":
    # TODO(synk): dropout is modeled as identity (eval mode); stochastic dropout not implemented.
    B, S, H, N = 2, 8, 32, 512     # batch, seq_len, hidden_size, num_item (N tiled by 128)

    key = jax.random.PRNGKey(0)
    k_am, k_lm, k_seq, k_mask, k_par = jax.random.split(key, 5)

    all_memory = jax.random.normal(k_am, (B, S, H), jnp.float32)
    last_memory = jax.random.normal(k_lm, (B, H), jnp.float32)
    item_seq = jax.random.randint(k_seq, (B, S), 0, N, jnp.int32)
    mask = jax.random.uniform(k_mask, (B, S)) < 0.2
    params = make_params(k_par, H, N)

    out = repeat_decoder_forward(all_memory, last_memory, item_seq, mask, params,
                                 tile_n=128)
    out = jax.block_until_ready(out)

    ref = reference_forward(all_memory, last_memory, item_seq, mask, params)
    assert out.shape == (B, N)
    assert jnp.allclose(out, ref, atol=1e-5, rtol=1e-5), "mismatch vs reference"

    print("KERNEL_OK")
</pallas_src>

<mosaic_0001>
module attributes {stable_mosaic.version = 11 : i64} {
  func.func @attention_kernel(%arg0: memref<2x8x32xf32, #tpu.memory_space<vmem>>, %arg1: memref<2x32xf32, #tpu.memory_space<vmem>>, %arg2: memref<2x8xi32, #tpu.memory_space<vmem>>, %arg3: memref<32x32xf32, #tpu.memory_space<vmem>>, %arg4: memref<32x32xf32, #tpu.memory_space<vmem>>, %arg5: memref<1x32xf32, #tpu.memory_space<vmem>>, %arg6: memref<1x1xf32, #tpu.memory_space<smem>>, %arg7: memref<2x64xf32, #tpu.memory_space<vmem>>) attributes {dimension_semantics = [], scalar_prefetch = 0 : i64, scratch_operands = 0 : i64, tpu.core_type = #tpu.core_type<tc>} {
    %c0 = arith.constant 0 : index
    %c0_0 = arith.constant 0 : index
    %c0_1 = arith.constant 0 : index
    %0 = vector.load %arg0[%c0, %c0_0, %c0_1] : memref<2x8x32xf32, #tpu.memory_space<vmem>>, vector<2x8x32xf32>
    %c0_2 = arith.constant 0 : index
    %c0_3 = arith.constant 0 : index
    %1 = vector.load %arg1[%c0_2, %c0_3] : memref<2x32xf32, #tpu.memory_space<vmem>>, vector<2x32xf32>
    %2 = vector.shape_cast %0 : vector<2x8x32xf32> to vector<16x32xf32>
    %c0_4 = arith.constant 0 : index
    %c0_5 = arith.constant 0 : index
    %3 = vector.load %arg3[%c0_4, %c0_5] : memref<32x32xf32, #tpu.memory_space<vmem>>, vector<32x32xf32>
    %cst = arith.constant dense<0.000000e+00> : vector<16x32xf32>
    %4 = tpu.matmul %2, %3, %cst {dimension_numbers = #tpu.dot_dimension_numbers<[1], [0], [0], [1], [0, 0, 1, 1], [], []>} : vector<16x32xf32>, vector<32x32xf32>, vector<16x32xf32> -> vector<16x32xf32>
    %5 = vector.shape_cast %4 : vector<16x32xf32> to vector<2x8x32xf32>
    %c0_6 = arith.constant 0 : index
    %c0_7 = arith.constant 0 : index
    %6 = vector.load %arg4[%c0_6, %c0_7] : memref<32x32xf32, #tpu.memory_space<vmem>>, vector<32x32xf32>
    %cst_8 = arith.constant dense<0.000000e+00> : vector<2x32xf32>
    %7 = tpu.matmul %1, %6, %cst_8 {dimension_numbers = #tpu.dot_dimension_numbers<[1], [0], [0], [1], [0, 0, 1, 1], [], []>} : vector<2x32xf32>, vector<32x32xf32>, vector<2x32xf32> -> vector<2x32xf32>
    %8 = vector.shape_cast %7 : vector<2x32xf32> to vector<2x1x32xf32>
    %9 = vector.broadcast %8 : vector<2x1x32xf32> to vector<2x8x32xf32>
    %10 = arith.addf %5, %9 : vector<2x8x32xf32>
    %11 = math.tanh %10 : vector<2x8x32xf32>
    %c0_9 = arith.constant 0 : index
    %c0_10 = arith.constant 0 : index
    %12 = vector.load %arg5[%c0_9, %c0_10] : memref<1x32xf32, #tpu.memory_space<vmem>>, vector<1x32xf32>
    %13 = vector.shape_cast %12 : vector<1x32xf32> to vector<1x1x32xf32>
    %14 = vector.broadcast %13 : vector<1x1x32xf32> to vector<2x8x32xf32>
    %15 = arith.mulf %11, %14 : vector<2x8x32xf32>
    %cst_11 = arith.constant dense<0.000000e+00> : vector<2x8xf32>
    %16 = vector.multi_reduction <add>, %15, %cst_11 [2] : vector<2x8x32xf32> to vector<2x8xf32>
    %c0_12 = arith.constant 0 : index
    %c0_13 = arith.constant 0 : index
    %17 = memref.load %arg6[%c0_12, %c0_13] : memref<1x1xf32, #tpu.memory_space<smem>>
    %18 = vector.broadcast %17 : f32 to vector<2x8xf32>
    %19 = arith.addf %16, %18 : vector<2x8xf32>
    %c0_14 = arith.constant 0 : index
    %c0_15 = arith.constant 0 : index
    %20 = vector.load %arg2[%c0_14, %c0_15] : memref<2x8xi32, #tpu.memory_space<vmem>>, vector<2x8xi32>
    %c0_i32 = arith.constant 0 : i32
    %21 = vector.broadcast %c0_i32 : i32 to vector<2x8xi32>
    %22 = arith.cmpi ne, %20, %21 : vector<2x8xi32>
    %cst_16 = arith.constant -1.000000e+09 : f32
    %23 = vector.broadcast %cst_16 : f32 to vector<2x8xf32>
    %24 = arith.select %22, %23, %19 : vector<2x8xi1>, vector<2x8xf32>
    %cst_17 = arith.constant dense<0xFF800000> : vector<2xf32>
    %25 = vector.multi_reduction <maximumf>, %24, %cst_17 [1] : vector<2x8xf32> to vector<2xf32>
    %26 = vector.shape_cast %25 : vector<2xf32> to vector<2x1xf32>
    %27 = vector.broadcast %26 : vector<2x1xf32> to vector<2x8xf32>
    %28 = arith.subf %24, %27 : vector<2x8xf32>
    %29 = math.exp %28 : vector<2x8xf32>
    %cst_18 = arith.constant dense<0.000000e+00> : vector<2xf32>
    %30 = vector.multi_reduction <add>, %29, %cst_18 [1] : vector<2x8xf32> to vector<2xf32>
    %31 = vector.shape_cast %30 : vector<2xf32> to vector<2x1xf32>
    %32 = vector.broadcast %31 : vector<2x1xf32> to vector<2x8xf32>
    %33 = arith.divf %29, %32 : vector<2x8xf32>
    %34 = vector.shape_cast %33 : vector<2x8xf32> to vector<2x8x1xf32>
    %35 = vector.broadcast %34 : vector<2x8x1xf32> to vector<2x8x32xf32>
    %36 = arith.mulf %0, %35 : vector<2x8x32xf32>
    %cst_19 = arith.constant dense<0.000000e+00> : vector<2x32xf32>
    %37 = vector.multi_reduction <add>, %36, %cst_19 [1] : vector<2x8x32xf32> to vector<2x32xf32>
    %38 = tpu.concatenate %37, %1 in 1 : vector<2x32xf32>, vector<2x32xf32> -> vector<2x64xf32>
    %c0_20 = arith.constant 0 : index
    %c0_21 = arith.constant 0 : index
    %39 = vector.load %arg7[%c0_20, %c0_21] : memref<2x64xf32, #tpu.memory_space<vmem>>, vector<2x64xf32>
    tpu.vector_store %arg7[%c0_20, %c0_21], %38 {strides = array<i32>} : memref<2x64xf32, #tpu.memory_space<vmem>>, vector<2x64xf32>,
    return
  }
}

</mosaic_0001>

<llo_original>
// kernel: tpu_custom_call.1
$region0: #{tpu_custom_call.1}
  #allocation0 [shape = 'u32[]', space=smem, size = 0x4, offset = 0x4, fixed_abs, tag = 'smem constant byte address 0x4 - core index']
  #allocation1 [shape = 'u32[144,128]{1,0:T(1,128)}', space=vmem, size = 0x12000, scoped, tag = 'internal scratch']
  #allocation2 [shape = 'f32[1,1]{1,0:T(1,128)S(6)}', space=smem, size = 0x200, scoped, tag = 'scoped memory for tpu_custom_call.1']
  %s0 = inlined_call_operand.hbm [shape: f32[2,8,32], index: 0, kind: input, shape index: {}]
  %s1 = inlined_call_operand.vmem [shape: f32[2,32], index: 1, kind: input, shape index: {}]
  %s2 = inlined_call_operand.vmem [shape: s32[2,8], index: 2, kind: input, shape index: {}]
  %s3 = inlined_call_operand.hbm [shape: f32[32,32], index: 3, kind: input, shape index: {}]
  %s4 = inlined_call_operand.hbm [shape: f32[32,32], index: 4, kind: input, shape index: {}]
  %s5 = inlined_call_operand.vmem [shape: f32[1,32], index: 5, kind: input, shape index: {}]
  %s6 = inlined_call_operand.<no memory space> [shape: f32[1,1], index: 6, kind: input, shape index: {}]
  %s7 = inlined_call_operand.hbm [shape: f32[2,64], index: 7, kind: output, shape index: {}]
  %s8 = sld [smem:[#allocation0]]
  $region50: #{tpu_custom_call.1} parent=0
    _
  %s10 = ssub.s32 1, %s8
  %s11 = scalar_select 0, %s10, %s8
  %12 = sst [smem:[#allocation2]] %s6
  $region1: #{tpu_custom_call.1} parent=0
    #allocation3 [shape = 'u8[8192]{0}', space=vmem, size = 0x2000, scoped, tag = 'input window, operand 0, single buffered']
    #allocation4 [shape = 's32[1]{0}', space=sflag, size = 0x4, scoped, tag = 'scoped memory for tpu_custom_call.1']
    #allocation5 [shape = 's32[1]{0}', space=sflag, size = 0x4, scoped, tag = 'scoped memory for tpu_custom_call.1']
    #allocation6 [shape = 'u8[16384]{0}', space=vmem, size = 0x4000, scoped, tag = 'input window, operand 3, single buffered']
    #allocation7 [shape = 's32[1]{0}', space=sflag, size = 0x4, scoped, tag = 'scoped memory for tpu_custom_call.1']
    #allocation8 [shape = 'u8[16384]{0}', space=vmem, size = 0x4000, scoped, tag = 'input window, operand 4, single buffered']
    #allocation9 [shape = 'u8[1024]{0}', space=vmem, size = 0x400, scoped, tag = 'output window, operand 0, single buffered']
    %13 = vsyncpa [#allocation4], 0
    %14 = vsyncpa [#allocation7], 0
    %15 = vsyncpa [#allocation5], 0
    // Predicated region
    $region2: #{tpu_custom_call.1} parent=1 // pred_check
      _
    $region3: #{tpu_custom_call.1} parent=1 // pred_check_branch
      %17 = sbr.rel (0) target = $region5
    $region4: #{tpu_custom_call.1} parent=1 // pred_region
      %s19 = ssub.s32 256, 256
      %20 = vsyncadd [#allocation4], %s19
      %s21 = sshll.u32 [#allocation3], 4
      %s22 = int_to_ptr.vmem [resolvable:$true] %s21
      %27 = dma.hbm_to_vmem [thread:$0]  %s0, 256, %s22, [#allocation4], 128, 128, 8
    $region5: #{tpu_custom_call.1} parent=1 // pred_fallthru
      _
    // Predicated region
    $region6: #{tpu_custom_call.1} parent=1 // pred_check
      _
    $region7: #{tpu_custom_call.1} parent=1 // pred_check_branch
      %29 = sbr.rel (0) target = $region9
    $region8: #{tpu_custom_call.1} parent=1 // pred_region
      _
    $region9: #{tpu_custom_call.1} parent=1 // pred_fallthru
      _
    // Predicated region
    $region10: #{tpu_custom_call.1} parent=1 // pred_check
      _
    $region11: #{tpu_custom_call.1} parent=1 // pred_check_branch
      %31 = sbr.rel (0) target = $region13
    $region12: #{tpu_custom_call.1} parent=1 // pred_region
      _
    $region13: #{tpu_custom_call.1} parent=1 // pred_fallthru
      _
    // Predicated region
    $region14: #{tpu_custom_call.1} parent=1 // pred_check
      _
    $region15: #{tpu_custom_call.1} parent=1 // pred_check_branch
      %33 = sbr.rel (0) target = $region17
    $region16: #{tpu_custom_call.1} parent=1 // pred_region
      %s35 = ssub.s32 512, 512
      %36 = vsyncadd [#allocation7], %s35
      %s37 = sshll.u32 [#allocation6], 4
      %s38 = int_to_ptr.vmem [resolvable:$true] %s37
      %43 = dma.hbm_to_vmem [thread:$0]  %s3, 512, %s38, [#allocation7], 128, 128, 8
    $region17: #{tpu_custom_call.1} parent=1 // pred_fallthru
      _
    // Predicated region
    $region18: #{tpu_custom_call.1} parent=1 // pred_check
      _
    $region19: #{tpu_custom_call.1} parent=1 // pred_check_branch
      %45 = sbr.rel (0) target = $region21
    $region20: #{tpu_custom_call.1} parent=1 // pred_region
      %s47 = ssub.s32 512, 512
      %48 = vsyncadd [#allocation7], %s47
      %s49 = sshll.u32 [#allocation8], 4
      %s50 = int_to_ptr.vmem [resolvable:$true] %s49
      %55 = dma.hbm_to_vmem [thread:$0]  %s4, 512, %s50, [#allocation7], 128, 128, 8
    $region21: #{tpu_custom_call.1} parent=1 // pred_fallthru
      _
    // Predicated region
    $region22: #{tpu_custom_call.1} parent=1 // pred_check
      _
    $region23: #{tpu_custom_call.1} parent=1 // pred_check_branch
      %57 = sbr.rel (0) target = $region25
    $region24: #{tpu_custom_call.1} parent=1 // pred_region
      _
    $region25: #{tpu_custom_call.1} parent=1 // pred_fallthru
      _
    // Predicated region
    $region26: #{tpu_custom_call.1} parent=1 // pred_check
      _
    $region27: #{tpu_custom_call.1} parent=1 // pred_check_branch
      %59 = sbr.rel (0) target = $region29
    $region28: #{tpu_custom_call.1} parent=1 // pred_region
      _
    $region29: #{tpu_custom_call.1} parent=1 // pred_fallthru
      _
    // Predicated region
    $region30: #{tpu_custom_call.1} parent=1 // pred_check
      _
    $region31: #{tpu_custom_call.1} parent=1 // pred_check_branch
      %61 = sbr.rel (0) target = $region33
    $region32: #{tpu_custom_call.1} parent=1 // pred_region
      %62 = dma.done [#allocation4], 256
    $region33: #{tpu_custom_call.1} parent=1 // pred_fallthru
      _
    // Predicated region
    $region34: #{tpu_custom_call.1} parent=1 // pred_check
      _
    $region35: #{tpu_custom_call.1} parent=1 // pred_check_branch
      %64 = sbr.rel (0) target = $region37
    $region36: #{tpu_custom_call.1} parent=1 // pred_region
      %65 = dma.done [#allocation7], 512
    $region37: #{tpu_custom_call.1} parent=1 // pred_fallthru
      _
    // Predicated region
    $region38: #{tpu_custom_call.1} parent=1 // pred_check
      _
    $region39: #{tpu_custom_call.1} parent=1 // pred_check_branch
      %67 = sbr.rel (0) target = $region41
    $region40: #{tpu_custom_call.1} parent=1 // pred_region
      %68 = dma.done [#allocation7], 512
    $region41: #{tpu_custom_call.1} parent=1 // pred_fallthru
      _
    %v69 = vld [vmem:[#allocation3] sm:$0xff]
    %v70 = vld [vmem:[#allocation3 + $0x8] sm:$0xff]
    %v71 = vld [vmem:[%s1] sm:$0x3]
    %v72 = vld [vmem:[#allocation6] sm:$0xff]
    %v73 = vld [vmem:[#allocation6 + $0x8] sm:$0xff]
    %v74 = vld [vmem:[#allocation6 + $0x10] sm:$0xff]
    %v75 = vld [vmem:[#allocation6 + $0x18] sm:$0xff]
    %vm76 = vcmask 261120
    %v78 = vsel %vm76, %v69, 0
    %v81 = vsel %vm76, %v70, 0
    %83 = vmatprep.subr.mxu0 0.0
    %84 = vmatpush1.msra.mxu0 %v72
    %85 = vmatprep.subr.mxu0 0.0
    %86 = vmatpush1.msra.mxu0 %v73
    %87 = vmatprep.subr.mxu0 0.0
    %88 = vmatpush1.msra.mxu0 %v74
    %89 = vmatprep.subr.mxu0 0.0
    %90 = vmatpush1.msra.mxu0 %v75
    %91 = vmatprep.subr.mxu0 0.0
    %92 = vmatpush1.msra.mxu0 0.0
    %93 = vmatprep.subr.mxu0 0.0
    %94 = vmatpush1.msra.mxu0 0.0
    %95 = vmatprep.subr.mxu0 0.0
    %96 = vmatpush1.msra.mxu0 0.0
    %97 = vmatprep.subr.mxu0 0.0
    %98 = vmatpush1.msra.mxu0 0.0
    %99 = vmatprep.subr.mxu0 0.0
    %100 = vmatpush1.msra.mxu0 0.0
    %101 = vmatprep.subr.mxu0 0.0
    %102 = vmatpush1.msra.mxu0 0.0
    %103 = vmatprep.subr.mxu0 0.0
    %104 = vmatpush1.msra.mxu0 0.0
    %105 = vmatprep.subr.mxu0 0.0
    %106 = vmatpush1.msra.mxu0 0.0
    %107 = vmatprep.subr.mxu0 0.0
    %108 = vmatpush1.msra.mxu0 0.0
    %109 = vmatprep.subr.mxu0 0.0
    %110 = vmatpush1.msra.mxu0 0.0
    %111 = vmatprep.subr.mxu0 0.0
    %112 = vmatpush1.msra.mxu0 0.0
    %113 = vmatprep.subr.mxu0 0.0
    %114 = vmatpush1.msra.mxu0 0.0
    %115 = vmatprep.subr.mxu0 0.0
    %116 = vmatpush1.msra.mxu0 0.0
    %117 = vmatprep.subr.mxu0 0.0
    %118 = vmatpush1.msra.mxu0 0.0
    %119 = vmatprep.subr.mxu0 0.0
    %120 = vmatpush1.msra.mxu0 0.0
    %121 = vmatprep.subr.mxu0 0.0
    %122 = vmatpush1.msra.mxu0 0.0
    %123 = vmatprep.subr.mxu0 0.0
    %124 = vmatpush1.msra.mxu0 0.0
    %125 = vmatprep.subr.mxu0 0.0
    %126 = vmatpush1.msra.mxu0 0.0
    %127 = vmatprep.subr.mxu0 0.0
    %128 = vmatpush1.msra.mxu0 0.0
    %129 = vmatprep.subr.mxu0 0.0
    %130 = vmatpush1.msra.mxu0 0.0
    %131 = vmatprep.subr.mxu0 0.0
    %132 = vmatpush1.msra.mxu0 0.0
    %133 = vmatprep.subr.mxu0 0.0
    %134 = vmatpush1.msra.mxu0 0.0
    %135 = vmatprep.subr.mxu0 0.0
    %136 = vmatpush1.msra.mxu0 0.0
    %137 = vmatprep.subr.mxu0 0.0
    %138 = vmatpush1.msra.mxu0 0.0
    %139 = vmatprep.subr.mxu0 0.0
    %140 = vmatpush1.msra.mxu0 0.0
    %141 = vmatprep.subr.mxu0 0.0
    %142 = vmatpush1.msra.mxu0 0.0
    %143 = vmatprep.subr.mxu0 0.0
    %144 = vmatpush1.msra.mxu0 0.0
    %145 = vmatprep.subr.mxu0 0.0
    %146 = vmatpush1.msra.mxu0 0.0
    %147 = vmatprep.mubr.f32.mxu0 0.0
    %148 = vmatmul.mubr.f32.gmra.mrb[0].mxu0 %v78
    %v149 = vpop.f32.mrb[0].mxu0
    %v150 = vadd.f32 0.0, %v149
    %v151 = vpop.f32.mrb[0].mxu0
    %152 = vmatprep.mubr.f32.mxu0 0.0
    %153 = vmatmul.mubr.f32.gmra.mrb[0].mxu0 %v81
    %v154 = vpop.f32.mrb[0].mxu0
    %v155 = vadd.f32 0.0, %v154
    %v156 = vpop.f32.mrb[0].mxu0
    %157 = vdwg.mxu0
    %v158 = vld [vmem:[#allocation8] sm:$0xff]
    %v159 = vld [vmem:[#allocation8 + $0x8] sm:$0xff]
    %v160 = vld [vmem:[#allocation8 + $0x10] sm:$0xff]
    %v161 = vld [vmem:[#allocation8 + $0x18] sm:$0xff]
    %v163 = vsel %vm76, %v71, 0
    %165 = vmatprep.subr.mxu0 0.0
    %166 = vmatpush1.msra.mxu0 %v158
    %167 = vmatprep.subr.mxu0 0.0
    %168 = vmatpush1.msra.mxu0 %v159
    %169 = vmatprep.subr.mxu0 0.0
    %170 = vmatpush1.msra.mxu0 %v160
    %171 = vmatprep.subr.mxu0 0.0
    %172 = vmatpush1.msra.mxu0 %v161
    %173 = vmatprep.subr.mxu0 0.0
    %174 = vmatpush1.msra.mxu0 0.0
    %175 = vmatprep.subr.mxu0 0.0
    %176 = vmatpush1.msra.mxu0 0.0
    %177 = vmatprep.subr.mxu0 0.0
    %178 = vmatpush1.msra.mxu0 0.0
    %179 = vmatprep.subr.mxu0 0.0
    %180 = vmatpush1.msra.mxu0 0.0
    %181 = vmatprep.subr.mxu0 0.0
    %182 = vmatpush1.msra.mxu0 0.0
    %183 = vmatprep.subr.mxu0 0.0
    %184 = vmatpush1.msra.mxu0 0.0
    %185 = vmatprep.subr.mxu0 0.0
    %186 = vmatpush1.msra.mxu0 0.0
    %187 = vmatprep.subr.mxu0 0.0
    %188 = vmatpush1.msra.mxu0 0.0
    %189 = vmatprep.subr.mxu0 0.0
    %190 = vmatpush1.msra.mxu0 0.0
    %191 = vmatprep.subr.mxu0 0.0
    %192 = vmatpush1.msra.mxu0 0.0
    %193 = vmatprep.subr.mxu0 0.0
    %194 = vmatpush1.msra.mxu0 0.0
    %195 = vmatprep.subr.mxu0 0.0
    %196 = vmatpush1.msra.mxu0 0.0
    %197 = vmatprep.subr.mxu0 0.0
    %198 = vmatpush1.msra.mxu0 0.0
    %199 = vmatprep.subr.mxu0 0.0
    %200 = vmatpush1.msra.mxu0 0.0
    %201 = vmatprep.subr.mxu0 0.0
    %202 = vmatpush1.msra.mxu0 0.0
    %203 = vmatprep.subr.mxu0 0.0
    %204 = vmatpush1.msra.mxu0 0.0
    %205 = vmatprep.subr.mxu0 0.0
    %206 = vmatpush1.msra.mxu0 0.0
    %207 = vmatprep.subr.mxu0 0.0
    %208 = vmatpush1.msra.mxu0 0.0
    %209 = vmatprep.subr.mxu0 0.0
    %210 = vmatpush1.msra.mxu0 0.0
    %211 = vmatprep.subr.mxu0 0.0
    %212 = vmatpush1.msra.mxu0 0.0
    %213 = vmatprep.subr.mxu0 0.0
    %214 = vmatpush1.msra.mxu0 0.0
    %215 = vmatprep.subr.mxu0 0.0
    %216 = vmatpush1.msra.mxu0 0.0
    %217 = vmatprep.subr.mxu0 0.0
    %218 = vmatpush1.msra.mxu0 0.0
    %219 = vmatprep.subr.mxu0 0.0
    %220 = vmatpush1.msra.mxu0 0.0
    %221 = vmatprep.subr.mxu0 0.0
    %222 = vmatpush1.msra.mxu0 0.0
    %223 = vmatprep.subr.mxu0 0.0
    %224 = vmatpush1.msra.mxu0 0.0
    %225 = vmatprep.subr.mxu0 0.0
    %226 = vmatpush1.msra.mxu0 0.0
    %227 = vmatprep.subr.mxu0 0.0
    %228 = vmatpush1.msra.mxu0 0.0
    %229 = vmatprep.mubr.f32.mxu0 0.0
    %230 = vmatmul.mubr.f32.gmra.mrb[0].mxu0 %v163
    %v231 = vpop.f32.mrb[0].mxu0
    %v232 = vadd.f32 0.0, %v231
    %v233 = vpop.f32.mrb[0].mxu0
    %234 = vdwg.mxu0
    %v237 = vunpack.c.l.s4 1966171168
    %v238 = vunpack.c.0.s8 %v237
    %v239 = vlaneseq
    %v240 = vshrl.u32 %v239, 7
    %v241 = vsub.s32 %v238, %v240
    %v242 = vrot.slane %v232, %v241
    %v243 = vcombine.high %v242, %v242
    %v245 = vunpack.c.l.s4 1966171168
    %v246 = vunpack.c.0.s8 %v245
    %v247 = vlaneseq
    %v248 = vshrl.u32 %v247, 7
    %v249 = vsub.s32 %v246, %v248
    %v250 = vrot.slane %v242, %v249
    %v252 = vunpack.c.l.s4 1966171168
    %v253 = vunpack.c.0.s8 %v252
    %v254 = vlaneseq
    %v255 = vshrl.u32 %v254, 7
    %v256 = vsub.s32 %v253, %v255
    %v257 = vrot.slane %v243, %v256
    %v258 = vlaneseq
    %v259 = vshrl.u32 %v258, 7
    %v260 = vsub.s32 0, %v259
    %v261 = vrot.slane %v250, %v260
    %v262 = vlaneseq
    %v263 = vshrl.u32 %v262, 7
    %v264 = vsub.s32 0, %v263
    %v265 = vrot.slane %v257, %v264
    %v268 = vadd.f32 %v150, %v261
    %v269 = vadd.f32 %v155, %v265
    %v270 = vtanh.pop %v268
    %v271 = vtanh.pop %v269
    %v272 = vld [vmem:[%s5] sm:$0x1]
    %v274 = vlaneseq
    %v275 = vshrl.u32 %v274, 7
    %v276 = vsub.s32 0, %v275
    %v277 = vrot.slane %v272, %v276
    %v279 = vmul.f32 %v270, %v277
    %v280 = vmul.f32 %v271, %v277
    %v281 = vsel %vm76, %v279, 0.0
    %282 = vadd.xlane.f32.xlu0 %v281
    %v283 = vpop.xlane.xlu0 %282
    %v284 = vsel %vm76, %v280, 0.0
    %285 = vadd.xlane.f32.xlu0 %v284
    %v286 = vpop.xlane.xlu0 %285
    %s287 = sld [smem:[#allocation2]]
    %v288 = vstv %s287
    %v289 = vadd.f32 %v283, %v288
    %v290 = vadd.f32 %v286, %v288
    %v291 = vld [vmem:[%s2] sm:$0x3]
    %vm292 = vcmp.ne.s32.totalorder %v291, 0
    %v295 = vlaneseq
    %v296 = vand.u32 %v295, 127
    %v297 = vlaneseq
    %v298 = vshrl.u32 %v297, 7
    %v299 = vsub.s32 %v296, %v298
    %v300 = vrot.slane %v289, %v299
    %v301 = vlaneseq
    %v302 = vshrl.u32 %v301, 7
    %v303 = vsub.s32 %v296, %v302
    %v304 = vrot.slane %v290, %v303
    %vm305 = vcmask 1041409
    %v306 = vsel %vm305, %v304, %v300
    %v308 = vsel %vm292, -1e+09, %v306
    %vm309 = vcmask 58368
    %v310 = vsel %vm309, %v308, -inf
    %311 = vmax.xlane.f32.xlu0 %v310
    %v312 = vpop.xlane.xlu0 %311
    %v313 = vsub.f32 %v308, %v312
    %v314 = vmul.f32 %v313, 1.442695
    %v315 = vpow.pop %v314
    %v316 = vsel %vm309, %v315, 0.0
    %317 = vadd.xlane.f32.xlu0 %v316
    %v318 = vpop.xlane.xlu0 %317
    %v319 = vrcp.pop %v318
    %v320 = vmul.f32 %v315, %v319
    %v321 = vlaneseq
    %v322 = vshrl.u32 %v321, 7
    %v323 = vsub.s32 0, %v322
    %v324 = vrot.slane %v320, %v323
    %326 = vbcast.lane.b32.xlu0 %v324, 256
    %v327 = vpop.permute.xlu0 %326
    %v328 = vlaneseq
    %v329 = vshrl.u32 %v328, 7
    %v330 = vsub.s32 1, %v329
    %v331 = vrot.slane %v320, %v330
    %333 = vbcast.lane.b32.xlu0 %v331, 256
    %v334 = vpop.permute.xlu0 %333
    %v335 = vmul.f32 %v69, %v327
    %v336 = vmul.f32 %v70, %v334
    %v337 = vsel %vm76, %v335, 0.0
    %v338 = vrot.slane %v337, 4
    %v339 = vadd.f32 %v337, %v338
    %v340 = vrot.slane %v339, 2
    %v341 = vadd.f32 %v339, %v340
    %v342 = vrot.slane %v341, 1
    %v343 = vadd.f32 %v341, %v342
    %v344 = vsel %vm76, %v336, 0.0
    %v345 = vrot.slane %v344, 4
    %v346 = vadd.f32 %v344, %v345
    %v347 = vrot.slane %v346, 2
    %v348 = vadd.f32 %v346, %v347
    %v349 = vrot.slane %v348, 1
    %v350 = vadd.f32 %v348, %v349
    %v353 = vsel %vm305, %v350, %v343
    %355 = vrot.lane.b32.xlu0 %v71, 32
    %v356 = vpop.permute.xlu0 %355
    %v358 = vsel %vm76, %v353, %v356
    %vm359 = vcmask 517120
    %360 = vst.msk [vmem:[#allocation9] sm:$0x3] %vm359, %v358
    // Predicated region
    $region42: #{tpu_custom_call.1} parent=1 // pred_check
      _
    $region43: #{tpu_custom_call.1} parent=1 // pred_check_branch
      %362 = sbr.rel (0) target = $region45
    $region44: #{tpu_custom_call.1} parent=1 // pred_region
      %s364 = ssub.s32 32, 32
      %365 = vsyncadd [#allocation5], %s364
      %s367 = sshll.u32 [#allocation9], 4
      %s368 = int_to_ptr.vmem [resolvable:$true] %s367
      %370 = dma.vmem_to_hbm [thread:$0]  %s368, 32, %s7, [#allocation5]
    $region45: #{tpu_custom_call.1} parent=1 // pred_fallthru
      _
    // Predicated region
    $region46: #{tpu_custom_call.1} parent=1 // pred_check
      _
    $region47: #{tpu_custom_call.1} parent=1 // pred_check_branch
      %372 = sbr.rel (0) target = $region49
    $region48: #{tpu_custom_call.1} parent=1 // pred_region
      %373 = dma.done [#allocation5], 32
    $region49: #{tpu_custom_call.1} parent=1 // pred_fallthru
      _
    %374 = vsyncpa [#allocation4], 1
    %375 = vsyncpa [#allocation7], 1
    %376 = vsyncpa [#allocation5], 1

</llo_original>
